<compile_context>
chip_gen: v6e
topology: v6e:2x2x1
jax: 0.10.0
libtpu: 0.0.40
codegen_flags: <defaults>
</compile_context>

<pallas_src>
import math

import jax
import jax.numpy as jnp
from jax.experimental import pallas as pl
from jax.experimental.pallas import tpu as pltpu


_LANE = 128
# Below this size the pallas_call dispatch overhead dominates a fused XLA op.
_MIN_PALLAS_BYTES = 1 << 20


def _residual_relu_kernel(x_ref, o_ref):
    # out = relu(x + residual) where residual == x (identity block, no downsample).
    x = x_ref[...]
    o_ref[...] = jnp.maximum(x + x, 0)


def _sublane_for(dtype):
    # Sub-32-bit dtypes pack along sublanes: bf16 vreg tile is [16,128], int8/fp8 [32,128].
    return max(8, 32 // jnp.dtype(dtype).itemsize)


def _tile_budget():
    """Per-generation (target_tile_bytes, vmem_limit_bytes).

    Budget: in + out, double-buffered => ~4x tile bytes of VMEM.
    """
    try:
        kind = jax.devices()[0].device_kind.lower()
    except Exception:  # pragma: no cover - defensive; CPU/interpret etc.
        kind = ""
    if "v7" in kind or "7x" in kind:
        # 64 MiB physical VMEM, 32 MiB scoped default: 4 x 8 MiB = 32 MiB, so
        # raise the scoped limit explicitly.
        return 8 << 20, 48 << 20
    if "v6" in kind:
        return 6 << 20, 64 << 20
    if "v5" in kind:
        return 4 << 20, 32 << 20
    # Unknown chip: conservative tile, leave scoped default alone.
    return 2 << 20, None


def _choose_width(total, sublane):
    """Widest lane-dense width dividing the flat length exactly (no padding)."""
    for w in (4096, 2048, 1024, 512, 256, 128):
        if total % w == 0 and total // w >= sublane:
            return w
    for w in (4096, 2048, 1024, 512, 256, 128):
        if total % w == 0:
            return w
    return None


def _pick_tile_rows(rows, target_rows, sublane):
    """Largest divisor of `rows` that is a multiple of `sublane` and <= target_rows.

    Using an exact divisor avoids a masked-store epilogue on the last grid
    step; fall back to the sublane-rounded target when no divisor exists.
    """
    best = None
    d = 1
    while d * d <= rows:
        if rows % d == 0:
            for cand in (d, rows // d):
                if cand % sublane == 0 and cand <= target_rows:
                    if best is None or cand > best:
                        best = cand
        d += 1
    return best if best is not None else target_rows


def base_residual_block_forward(x, *, force_pallas=False):
    """Forward of BaseResidualBlock (default downsample=None): relu(x + x).

    x: (N, C, H, W). Returns same shape/dtype.
    """
    orig_shape = x.shape
    total = math.prod(orig_shape)
    itemsize = jnp.dtype(x.dtype).itemsize
    sublane = _sublane_for(x.dtype)

    if not force_pallas and total * itemsize < _MIN_PALLAS_BYTES:
        # Tiny activations: let XLA fuse the elementwise.
        return jnp.maximum(x + x, 0)

    width = _choose_width(total, sublane)
    if width is None:
        # Ragged flat length (not a multiple of 128): plain fused XLA needs no
        # reshape at all and avoids the pad + slice HBM round-trips.
        return jnp.maximum(x + x, 0)

    rows = total // width
    x2d = x.reshape(rows, width)

    target_bytes, vmem_limit = _tile_budget()
    target_rows = max(sublane, (target_bytes // (itemsize * width)) // sublane * sublane)
    tile_rows = min(target_rows, rows)

    # Guarantee >= 2 grid steps when possible so v7x megacore ("parallel")
    # sharding actually engages; neutral on single-TC v5e / v6e.
    if rows >= 2 * sublane:
        half = max(sublane, (rows // 2) // sublane * sublane)
        tile_rows = min(tile_rows, half)

    tile_rows = _pick_tile_rows(rows, tile_rows, sublane)
    grid = (pl.cdiv(rows, tile_rows),)

    out2d = pl.pallas_call(
        _residual_relu_kernel,
        out_shape=jax.ShapeDtypeStruct((rows, width), x.dtype),
        grid_spec=pltpu.PrefetchScalarGridSpec(
            num_scalar_prefetch=0,
            grid=grid,
            in_specs=[pl.BlockSpec((tile_rows, width), lambda i: (i, 0))],
            out_specs=pl.BlockSpec((tile_rows, width), lambda i: (i, 0)),
        ),
        compiler_params=pltpu.CompilerParams(
            dimension_semantics=("parallel",),
            vmem_limit_bytes=vmem_limit,
        ),
        # Elementwise in-place update: output reuses the input HBM buffer.
        input_output_aliases={0: 0},
        # Memory-bound hint for XLA's scheduler (1 read + 1 write pass).
        cost_estimate=pl.CostEstimate(
            flops=2 * total,
            transcendentals=0,
            bytes_accessed=2 * total * itemsize,
        ),
    )(x2d)

    return out2d.reshape(orig_shape)


# TODO(synk): `downsample` is an arbitrary user-supplied nn.Module (None by
# default); only the default (identity residual) path is implemented here.


if __name__ == "__main__":
    key = jax.random.PRNGKey(0)
    # Small shape consistent with the module: batch=2, channels=4, spatial=16.
    x = jax.random.normal(key, (2, 4, 16, 16), dtype=jnp.float32)

    # Force the Pallas path so the kernel is exercised at this small test shape
    # (the auto path falls back to fused XLA below ~1 MiB).
    out = jax.block_until_ready(base_residual_block_forward(x, force_pallas=True))
    ref = jnp.maximum(2.0 * x, 0.0)
    assert out.shape == x.shape and out.dtype == x.dtype
    assert jnp.allclose(out, ref, atol=1e-6, rtol=1e-6)

    # Size-gated (auto) path.
    out_auto = jax.block_until_ready(base_residual_block_forward(x))
    assert jnp.allclose(out_auto, ref, atol=1e-6, rtol=1e-6)

    # bf16 input: exercises the dtype-aware sublane rounding.
    xb = jax.random.normal(jax.random.PRNGKey(1), (2, 16, 32, 32), dtype=jnp.bfloat16)
    outb = jax.block_until_ready(base_residual_block_forward(xb, force_pallas=True))
    refb = jnp.maximum(xb.astype(jnp.float32) * 2.0, 0.0).astype(jnp.bfloat16)
    assert outb.shape == xb.shape and outb.dtype == xb.dtype
    assert jnp.allclose(outb.astype(jnp.float32), refb.astype(jnp.float32))

    print("KERNEL_OK")
</pallas_src>

<mosaic_0001>
module attributes {stable_mosaic.version = 11 : i64} {
  func.func @_residual_relu_kernel(%arg0: i32, %arg1: memref<8x256xf32, #tpu.memory_space<vmem>>, %arg2: memref<8x256xf32, #tpu.memory_space<vmem>>) attributes {dimension_semantics = [#tpu.dimension_semantics<parallel>], iteration_bounds = array<i64: 1>, scalar_prefetch = 0 : i64, scratch_operands = 0 : i64, tpu.core_type = #tpu.core_type<tc>, window_params = [{transform_indices = @transform_0, window_bounds = array<i64: 8, 256>}, {transform_indices = @transform_1, window_bounds = array<i64: 8, 256>}]} {
    %c0 = arith.constant 0 : index
    %c0_0 = arith.constant 0 : index
    %0 = vector.load %arg1[%c0, %c0_0] : memref<8x256xf32, #tpu.memory_space<vmem>>, vector<8x256xf32>
    %1 = arith.addf %0, %0 : vector<8x256xf32>
    %cst = arith.constant 0.000000e+00 : f32
    %2 = vector.broadcast %cst : f32 to vector<8x256xf32>
    %3 = arith.maximumf %1, %2 : vector<8x256xf32>
    %c0_1 = arith.constant 0 : index
    %c0_2 = arith.constant 0 : index
    %4 = vector.load %arg2[%c0_1, %c0_2] : memref<8x256xf32, #tpu.memory_space<vmem>>, vector<8x256xf32>
    tpu.vector_store %arg2[%c0_1, %c0_2], %3 {strides = array<i32>} : memref<8x256xf32, #tpu.memory_space<vmem>>, vector<8x256xf32>,
    return
  }
  func.func @transform_0(%arg0: i32) -> (i32, i32) {
    %c0_i32 = arith.constant 0 : i32
    %c0_i32_0 = arith.constant 0 : i32
    return %arg0, %c0_i32 : i32, i32
  }
  func.func @transform_1(%arg0: i32) -> (i32, i32) {
    %c0_i32 = arith.constant 0 : i32
    %c0_i32_0 = arith.constant 0 : i32
    return %arg0, %c0_i32 : i32, i32
  }
}

</mosaic_0001>

<llo_original>
// kernel: tpu_custom_call.1
$region0: #{tpu_custom_call.1}
  #allocation0 [shape = 'u32[]', space=smem, size = 0x4, offset = 0x4, fixed_abs, tag = 'smem constant byte address 0x4 - core index']
  #allocation1 [shape = 'u32[144,128]{1,0:T(1,128)}', space=vmem, size = 0x12000, scoped, tag = 'internal scratch']
  %s0 = inlined_call_operand.hbm [shape: f32[8,256], index: 0, kind: input, shape index: {}, may-alias: {0,1}]
  %s1 = inlined_call_operand.hbm [shape: f32[8,256], index: 1, kind: output, shape index: {}, may-alias: {0,1}]
  %s2 = sld [smem:[#allocation0]]
  $region18: #{tpu_custom_call.1} parent=0
    _
  %s4 = ssub.s32 1, %s2
  %s5 = scalar_select 0, %s4, %s2
  $region1: #{tpu_custom_call.1} parent=0
    #allocation2 [shape = 'u8[8192]{0}', space=vmem, size = 0x2000, scoped, tag = 'input window, operand 0, single buffered']
    #allocation3 [shape = 's32[1]{0}', space=sflag, size = 0x4, scoped, tag = 'scoped memory for tpu_custom_call.1']
    #allocation4 [shape = 's32[1]{0}', space=sflag, size = 0x4, scoped, tag = 'scoped memory for tpu_custom_call.1']
    #allocation5 [shape = 'u8[8192]{0}', space=vmem, size = 0x2000, scoped, tag = 'output window, operand 0, single buffered']
    %6 = vsyncpa [#allocation3], 0
    %7 = vsyncpa [#allocation4], 0
    // Predicated region
    $region2: #{tpu_custom_call.1} parent=1 // pred_check
      _
    $region3: #{tpu_custom_call.1} parent=1 // pred_check_branch
      %9 = sbr.rel (0) target = $region5
    $region4: #{tpu_custom_call.1} parent=1 // pred_region
      %s11 = ssub.s32 256, 256
      %12 = vsyncadd [#allocation3], %s11
      %s14 = sshll.u32 [#allocation2], 4
      %s15 = int_to_ptr.vmem [resolvable:$true] %s14
      %17 = dma.hbm_to_vmem [thread:$0]  %s0, 256, %s15, [#allocation3]
    $region5: #{tpu_custom_call.1} parent=1 // pred_fallthru
      _
    // Predicated region
    $region6: #{tpu_custom_call.1} parent=1 // pred_check
      _
    $region7: #{tpu_custom_call.1} parent=1 // pred_check_branch
      %19 = sbr.rel (0) target = $region9
    $region8: #{tpu_custom_call.1} parent=1 // pred_region
      %20 = dma.done [#allocation3], 256
    $region9: #{tpu_custom_call.1} parent=1 // pred_fallthru
      _
    %v21 = vld [vmem:[#allocation2] sm:$0xff]
    %v22 = vld [vmem:[#allocation2 + $0x8] sm:$0xff]
    %v23 = vadd.f32 %v21, %v21
    %v24 = vadd.f32 %v22, %v22
    %v25 = vmax.f32 %v23, 0.0
    %v26 = vmax.f32 %v24, 0.0
    %27 = vst [vmem:[#allocation5] sm:$0xff] %v25
    %28 = vst [vmem:[#allocation5 + $0x8] sm:$0xff] %v26
    // Predicated region
    $region10: #{tpu_custom_call.1} parent=1 // pred_check
      _
    $region11: #{tpu_custom_call.1} parent=1 // pred_check_branch
      %30 = sbr.rel (0) target = $region13
    $region12: #{tpu_custom_call.1} parent=1 // pred_region
      %s32 = ssub.s32 256, 256
      %33 = vsyncadd [#allocation4], %s32
      %s35 = sshll.u32 [#allocation5], 4
      %s36 = int_to_ptr.vmem [resolvable:$true] %s35
      %38 = dma.vmem_to_hbm [thread:$0]  %s36, 256, %s1, [#allocation4]
    $region13: #{tpu_custom_call.1} parent=1 // pred_fallthru
      _
    // Predicated region
    $region14: #{tpu_custom_call.1} parent=1 // pred_check
      _
    $region15: #{tpu_custom_call.1} parent=1 // pred_check_branch
      %40 = sbr.rel (0) target = $region17
    $region16: #{tpu_custom_call.1} parent=1 // pred_region
      %41 = dma.done [#allocation4], 256
    $region17: #{tpu_custom_call.1} parent=1 // pred_fallthru
      _
    %42 = vsyncpa [#allocation3], 1
    %43 = vsyncpa [#allocation4], 1

</llo_original>
